<compile_context>
chip_gen: v5e
topology: v5e:2x2
jax: 0.10.0
libtpu: 0.0.40
codegen_flags: <defaults>
</compile_context>

<pallas_src>
import functools
import math

import jax
import jax.numpy as jnp
from jax.experimental import pallas as pl
from jax.experimental.pallas import tpu as pltpu

_MATMUL_DTYPE = jnp.bfloat16


def _choose_block(dim, preferred):
    """Largest block <= preferred that evenly divides dim (full-extent fallback)."""
    if dim <= preferred:
        return dim
    if dim % preferred == 0:
        return preferred
    # TODO(synk): mask ragged tail blocks instead of falling back to the full extent.
    return dim


def _block_diag(w, heads):
    """Lift a shared per-head (D, D) weight to a block-diagonal (H*D, H*D) matrix."""
    d = w.shape[0]
    eye = jnp.eye(heads, dtype=w.dtype)
    return jnp.einsum("ab,od->aobd", eye, w).reshape(heads * d, heads * d)


# ----------------------------------------------------------------------------
# Row-tiled linear kernels:  y = x @ W^T (+ b), weights pre-transposed in wrapper.
# ----------------------------------------------------------------------------
def _linear_kernel(x_ref, wt_ref, o_ref):
    x = x_ref[...].astype(_MATMUL_DTYPE)
    y = jnp.dot(x, wt_ref[...], preferred_element_type=jnp.float32)
    o_ref[...] = y.astype(o_ref.dtype)


def _linear_bias_kernel(x_ref, wt_ref, b_ref, o_ref):
    x = x_ref[...].astype(_MATMUL_DTYPE)
    y = jnp.dot(x, wt_ref[...], preferred_element_type=jnp.float32)
    o_ref[...] = (y + b_ref[...]).astype(o_ref.dtype)


def _row_tiled_linear(x, wt, bias=None, *, out_dtype, block_rows=256):
    rows, e_in = x.shape
    e_out = wt.shape[1]
    tm = _choose_block(rows, block_rows)
    grid = (rows // tm,)

    in_specs = [
        pl.BlockSpec((tm, e_in), lambda i: (i, 0)),
        pl.BlockSpec((e_in, e_out), lambda i: (0, 0)),   # weight stays VMEM-resident
    ]
    operands = [x, wt]
    if bias is None:
        kernel = _linear_kernel
    else:
        kernel = _linear_bias_kernel
        in_specs.append(pl.BlockSpec((1, e_out), lambda i: (0, 0)))
        operands.append(bias)

    return pl.pallas_call(
        kernel,
        out_shape=jax.ShapeDtypeStruct((rows, e_out), out_dtype),
        grid=grid,
        in_specs=in_specs,
        out_specs=pl.BlockSpec((tm, e_out), lambda i: (i, 0)),
        compiler_params=pltpu.CompilerParams(dimension_semantics=("parallel",)),
    )(*operands)


# ----------------------------------------------------------------------------
# Flash-style attention kernel.  Per grid step processes ALL heads for one
# (batch, q_block, kv_block) triple; output is a lane-dense (Bq, H*D) slab.
#   q_ref, k_ref, v_ref : (H, Bq|Bk, D) bf16   (1/sqrt(D) already folded into q proj)
#   mask_ref            : (1, Bk) int32        (zeros = masked)
#   o_ref               : (Bq, H*D)
# ----------------------------------------------------------------------------
def _flash_attn_kernel(q_ref, k_ref, v_ref, mask_ref, o_ref,
                       m_sc, l_sc, acc_sc, *, num_heads, head_dim):
    kb = pl.program_id(2)

    @pl.when(kb == 0)
    def _init():
        m_sc[...] = jnp.full(m_sc.shape, -jnp.inf, m_sc.dtype)
        l_sc[...] = jnp.zeros(l_sc.shape, l_sc.dtype)
        acc_sc[...] = jnp.zeros(acc_sc.shape, acc_sc.dtype)

    q = q_ref[...]                                       # (H, Bq, D) bf16
    k = k_ref[...]                                       # (H, Bk, D) bf16
    v = v_ref[...]                                       # (H, Bk, D) bf16

    # Per-head scores, f32 accumulation on the MXU (no in-kernel transposes).
    s = jnp.einsum("hqd,hkd->hqk", q, k,
                   preferred_element_type=jnp.float32)   # (H, Bq, Bk) f32

    # Broadcast the tiny padding mask inside the kernel (additive -1e20 bias).
    mask_bias = jnp.where(mask_ref[...] == 0,
                          jnp.float32(-1e20), jnp.float32(0.0))   # (1, Bk)
    s = s + mask_bias[None, :, :]

    # Online softmax update (f32 elementwise).
    m_prev = m_sc[...]
    m_cur = jnp.max(s, axis=-1, keepdims=True)           # (H, Bq, 1)
    m_new = jnp.maximum(m_prev, m_cur)
    alpha = jnp.exp(m_prev - m_new)
    p = jnp.exp(s - m_new)                               # (H, Bq, Bk) f32

    l_sc[...] = alpha * l_sc[...] + jnp.sum(p, axis=-1, keepdims=True)
    pv = jnp.einsum("hqk,hkd->hqd", p.astype(v.dtype), v,
                    preferred_element_type=jnp.float32)  # (H, Bq, D) f32
    acc_sc[...] = alpha * acc_sc[...] + pv
    m_sc[...] = m_new

    @pl.when(kb == pl.num_programs(2) - 1)
    def _finalize():
        inv_l = pl.reciprocal(l_sc[...], approx=True)    # (H, Bq, 1), EUP slot
        acc = acc_sc[...]                                # (H, Bq, D)
        for h in range(num_heads):                       # static loop: lane-dense output
            o_ref[:, h * head_dim:(h + 1) * head_dim] = (
                acc[h] * inv_l[h]).astype(o_ref.dtype)


def _flash_attention(qh, kh, vh, mask_nk, *, block_q=256, block_k=512):
    n, h, q_len, d = qh.shape
    k_len = kh.shape[2]
    e = h * d
    bq = _choose_block(q_len, block_q)
    bk = _choose_block(k_len, block_k)
    grid = (n, q_len // bq, k_len // bk)

    kernel = functools.partial(_flash_attn_kernel, num_heads=h, head_dim=d)
    return pl.pallas_call(
        kernel,
        out_shape=jax.ShapeDtypeStruct((n, q_len, e), _MATMUL_DTYPE),
        grid=grid,
        in_specs=[
            pl.BlockSpec((None, h, bq, d), lambda b, qb, kb: (b, 0, qb, 0)),
            pl.BlockSpec((None, h, bk, d), lambda b, qb, kb: (b, 0, kb, 0)),
            pl.BlockSpec((None, h, bk, d), lambda b, qb, kb: (b, 0, kb, 0)),
            pl.BlockSpec((None, 1, bk), lambda b, qb, kb: (b, 0, kb)),
        ],
        out_specs=pl.BlockSpec((None, bq, e), lambda b, qb, kb: (b, qb, 0)),
        scratch_shapes=[
            pltpu.VMEM((h, bq, 1), jnp.float32),   # running max
            pltpu.VMEM((h, bq, 1), jnp.float32),   # running sum
            pltpu.VMEM((h, bq, d), jnp.float32),   # output accumulator
        ],
        compiler_params=pltpu.CompilerParams(
            dimension_semantics=("parallel", "parallel", "arbitrary"),
            vmem_limit_bytes=48 * 1024 * 1024,     # headroom under v7x's 64 MiB VMEM
        ),
    )(qh, kh, vh, mask_nk)


# ----------------------------------------------------------------------------
# Wrapper matching the PyTorch forward(values, keys, query, mask)
#   values, keys, query: (len, N, embed_size)   (time-major, like the module)
#   mask: None or a padding-style mask (N, 1, 1, key_len)  (zeros = masked)
# ----------------------------------------------------------------------------
def scaled_dot_product_attention(values, keys, query, mask, params, *, heads):
    w_values, w_keys, w_queries, w_fc, b_fc = params

    q_len, n, e = query.shape
    k_len = keys.shape[0]
    v_len = values.shape[0]
    assert k_len == v_len, "key_len must equal value_len"
    h = heads
    d = e // h
    assert d * h == e

    inv_sqrt_d = 1.0 / math.sqrt(d)

    # Block-diagonal per-head weights, pre-transposed, bf16; scale folded into Wq.
    wt_q = _block_diag(w_queries * inv_sqrt_d, h).T.astype(_MATMUL_DTYPE)
    wt_k = _block_diag(w_keys, h).T.astype(_MATMUL_DTYPE)
    wt_v = _block_diag(w_values, h).T.astype(_MATMUL_DTYPE)
    wt_fc = w_fc.T.astype(_MATMUL_DTYPE)
    b_fc2 = b_fc.reshape(1, e).astype(jnp.float32)

    # One big lane-dense projection matmul per tensor: (L*N, E) @ (E, E).
    qp = _row_tiled_linear(query.reshape(q_len * n, e), wt_q, out_dtype=_MATMUL_DTYPE)
    kp = _row_tiled_linear(keys.reshape(k_len * n, e), wt_k, out_dtype=_MATMUL_DTYPE)
    vp = _row_tiled_linear(values.reshape(v_len * n, e), wt_v, out_dtype=_MATMUL_DTYPE)

    def to_nhld(x, length):
        # (L*N, E) -> (L, N, H, D) -> (N, H, L, D)   (bf16, half the bytes of before)
        return jnp.transpose(x.reshape(length, n, h, d), (1, 2, 0, 3))

    qh = to_nhld(qp, q_len)
    kh = to_nhld(kp, k_len)
    vh = to_nhld(vp, v_len)

    if mask is None:
        mask_nk = jnp.ones((n, 1, k_len), jnp.int32)
    else:
        # TODO(synk): support fully general (N, H, Q, K) masks (needs per-(h, q) blocks).
        assert mask.ndim == 4 and mask.shape[1] == 1 and mask.shape[2] == 1, \
            "only padding-style masks (N, 1, 1, key_len) are supported"
        mask_nk = mask.reshape(n, 1, k_len).astype(jnp.int32)

    attn = _flash_attention(qh, kh, vh, mask_nk)          # (N, q_len, E) bf16, lane-dense

    # fc_out on time-major rows, row-tiled, then back to (q_len, N, E).
    x = jnp.transpose(attn, (1, 0, 2)).reshape(q_len * n, e)
    out = _row_tiled_linear(x, wt_fc, bias=b_fc2, out_dtype=jnp.float32)
    return out.reshape(q_len, n, e)


# ----------------------------------------------------------------------------
# Pure-JAX f32 reference (mirrors the PyTorch forward exactly).
# ----------------------------------------------------------------------------
def _reference(values, keys, query, mask, params, *, heads):
    w_values, w_keys, w_queries, w_fc, b_fc = params
    q_len, n, e = query.shape
    k_len = keys.shape[0]
    v_len = values.shape[0]
    h, d = heads, e // heads

    v4 = values.reshape(v_len, n, h, d) @ w_values.T
    k4 = keys.reshape(k_len, n, h, d) @ w_keys.T
    q4 = query.reshape(q_len, n, h, d) @ w_queries.T

    energy = jnp.einsum("qnhd,knhd->nhqk", q4, k4)
    if mask is not None:
        mask_b = jnp.broadcast_to(mask, (n, h, q_len, k_len))
        energy = jnp.where(mask_b == 0, jnp.float32(-1e20), energy)
    attn = jax.nn.softmax(energy / math.sqrt(d), axis=3)
    out = jnp.einsum("nhql,lnhd->qnhd", attn, v4).reshape(q_len, n, h * d)
    return out @ w_fc.T + b_fc


if __name__ == "__main__":
    embed_size, heads = 32, 4
    head_dim = embed_size // heads
    seq_len, batch = 8, 2

    key = jax.random.PRNGKey(0)
    kq, kk, kv, kwq, kwk, kwv, kwf, kbf, kmask = jax.random.split(key, 9)

    query = jax.random.normal(kq, (seq_len, batch, embed_size), jnp.float32)
    keys_in = jax.random.normal(kk, (seq_len, batch, embed_size), jnp.float32)
    values_in = jax.random.normal(kv, (seq_len, batch, embed_size), jnp.float32)

    scale_h = 1.0 / math.sqrt(head_dim)
    scale_e = 1.0 / math.sqrt(embed_size)
    w_queries = jax.random.uniform(kwq, (head_dim, head_dim), jnp.float32, -scale_h, scale_h)
    w_keys = jax.random.uniform(kwk, (head_dim, head_dim), jnp.float32, -scale_h, scale_h)
    w_values = jax.random.uniform(kwv, (head_dim, head_dim), jnp.float32, -scale_h, scale_h)
    w_fc = jax.random.uniform(kwf, (embed_size, embed_size), jnp.float32, -scale_e, scale_e)
    b_fc = jax.random.uniform(kbf, (embed_size,), jnp.float32, -scale_e, scale_e)
    params = (w_values, w_keys, w_queries, w_fc, b_fc)

    # Padding-style mask: (N, 1, 1, key_len), zeros mean "masked".
    mask = (jax.random.uniform(kmask, (batch, 1, 1, seq_len)) > 0.2).astype(jnp.int32)

    out = scaled_dot_product_attention(values_in, keys_in, query, mask, params, heads=heads)
    out = jax.block_until_ready(out)

    ref = _reference(values_in, keys_in, query, mask, params, heads=heads)
    assert out.shape == (seq_len, batch, embed_size)
    # bf16 matmul operands (f32 accumulation) vs the pure-f32 reference -> relaxed tolerance.
    assert jnp.allclose(out, ref, atol=3e-2, rtol=3e-2), "mismatch vs reference"

    print("KERNEL_OK")
</pallas_src>

<mosaic_0001>
module attributes {stable_mosaic.version = 11 : i64} {
  func.func @_linear_kernel(%arg0: i32, %arg1: memref<16x32xf32, #tpu.memory_space<vmem>>, %arg2: memref<32x32xbf16, #tpu.memory_space<vmem>>, %arg3: memref<16x32xbf16, #tpu.memory_space<vmem>>) attributes {dimension_semantics = [#tpu.dimension_semantics<parallel>], iteration_bounds = array<i64: 1>, scalar_prefetch = 0 : i64, scratch_operands = 0 : i64, tpu.core_type = #tpu.core_type<tc>, window_params = [{transform_indices = @transform_0, window_bounds = array<i64: 16, 32>}, {pipeline_mode = #tpu.pipeline_mode<synchronous>, transform_indices = @transform_1, window_bounds = array<i64: 32, 32>}, {transform_indices = @transform_2, window_bounds = array<i64: 16, 32>}]} {
    %c0 = arith.constant 0 : index
    %c0_0 = arith.constant 0 : index
    %0 = vector.load %arg1[%c0, %c0_0] : memref<16x32xf32, #tpu.memory_space<vmem>>, vector<16x32xf32>
    %1 = arith.truncf %0 : vector<16x32xf32> to vector<16x32xbf16>
    %c0_1 = arith.constant 0 : index
    %c0_2 = arith.constant 0 : index
    %2 = vector.load %arg2[%c0_1, %c0_2] : memref<32x32xbf16, #tpu.memory_space<vmem>>, vector<32x32xbf16>
    %cst = arith.constant dense<0.000000e+00> : vector<16x32xf32>
    %3 = tpu.matmul %1, %2, %cst {dimension_numbers = #tpu.dot_dimension_numbers<[1], [0], [0], [1], [0, 0, 1, 1], [], []>} : vector<16x32xbf16>, vector<32x32xbf16>, vector<16x32xf32> -> vector<16x32xf32>
    %4 = arith.truncf %3 : vector<16x32xf32> to vector<16x32xbf16>
    %c0_3 = arith.constant 0 : index
    %c0_4 = arith.constant 0 : index
    %5 = vector.load %arg3[%c0_3, %c0_4] : memref<16x32xbf16, #tpu.memory_space<vmem>>, vector<16x32xbf16>
    tpu.vector_store %arg3[%c0_3, %c0_4], %4 {strides = array<i32>} : memref<16x32xbf16, #tpu.memory_space<vmem>>, vector<16x32xbf16>,
    return
  }
  func.func @transform_0(%arg0: i32) -> (i32, i32) {
    %c0_i32 = arith.constant 0 : i32
    %c0_i32_0 = arith.constant 0 : i32
    return %arg0, %c0_i32 : i32, i32
  }
  func.func @transform_1(%arg0: i32) -> (i32, i32) {
    %c0_i32 = arith.constant 0 : i32
    %c0_i32_0 = arith.constant 0 : i32
    %c0_i32_1 = arith.constant 0 : i32
    return %c0_i32, %c0_i32_0 : i32, i32
  }
  func.func @transform_2(%arg0: i32) -> (i32, i32) {
    %c0_i32 = arith.constant 0 : i32
    %c0_i32_0 = arith.constant 0 : i32
    return %arg0, %c0_i32 : i32, i32
  }
}

</mosaic_0001>

<llo_original>
// kernel: tpu_custom_call.1
$region0: #{tpu_custom_call.1}
  #allocation0 [shape = 'u32[]', space=smem, size = 0x4, offset = 0x4, fixed_abs, tag = 'smem constant byte address 0x4 - core index']
  #allocation1 [shape = 'u32[72,128]{1,0:T(1,128)}', space=vmem, size = 0x9000, scoped, tag = 'internal scratch']
  %s0 = inlined_call_operand.hbm [shape: f32[16,32], index: 0, kind: input, shape index: {}]
  %s1 = inlined_call_operand.hbm [shape: bf16[32,32], index: 1, kind: input, shape index: {}]
  %s2 = inlined_call_operand.hbm [shape: bf16[16,32], index: 2, kind: output, shape index: {}]
  %s3 = sld [smem:[#allocation0]]
  $region26: #{tpu_custom_call.1} parent=0
    _
  %s5 = ssub.s32 1, %s3
  %s6 = scalar_select 0, %s5, %s3
  $region1: #{tpu_custom_call.1} parent=0
    #allocation2 [shape = 'u8[8192]{0}', space=vmem, size = 0x2000, scoped, tag = 'input window, operand 0, single buffered']
    #allocation3 [shape = 's32[1]{0}', space=sflag, size = 0x4, scoped, tag = 'scoped memory for tpu_custom_call.1']
    #allocation4 [shape = 's32[1]{0}', space=sflag, size = 0x4, scoped, tag = 'scoped memory for tpu_custom_call.1']
    #allocation5 [shape = 'u8[8192]{0}', space=vmem, size = 0x2000, scoped, tag = 'input window, operand 1, single buffered']
    #allocation6 [shape = 's32[1]{0}', space=sflag, size = 0x4, scoped, tag = 'scoped memory for tpu_custom_call.1']
    #allocation7 [shape = 'u8[4096]{0}', space=vmem, size = 0x1000, scoped, tag = 'output window, operand 0, single buffered']
    %7 = vsyncpa [#allocation3], 0
    %8 = vsyncpa [#allocation6], 0
    %9 = vsyncpa [#allocation4], 0
    // Predicated region
    $region2: #{tpu_custom_call.1} parent=1 // pred_check
      _
    $region3: #{tpu_custom_call.1} parent=1 // pred_check_branch
      %11 = sbr.rel (0) target = $region5
    $region4: #{tpu_custom_call.1} parent=1 // pred_region
      %13 = vsyncadd [#allocation3], 0
      %s14 = sshll.u32 %s0, 4
      %s15 = int_to_ptr.hbm [resolvable:$true] %s14
      %s16 = sshll.u32 [#allocation2], 4
      %s17 = int_to_ptr.vmem [resolvable:$true] %s16
      %22 = dma.hbm_to_vmem [thread:$0]  %s15, 256, %s17, [#allocation3], 128, 128, 8
    $region5: #{tpu_custom_call.1} parent=1 // pred_fallthru
      _
    // Predicated region
    $region6: #{tpu_custom_call.1} parent=1 // pred_check
      _
    $region7: #{tpu_custom_call.1} parent=1 // pred_check_branch
      %24 = sbr.rel (0) target = $region9
    $region8: #{tpu_custom_call.1} parent=1 // pred_region
      %26 = vsyncadd [#allocation6], 0
      %s27 = sshll.u32 %s1, 4
      %s28 = int_to_ptr.hbm [resolvable:$true] %s27
      %s29 = sshll.u32 [#allocation5], 4
      %s30 = int_to_ptr.vmem [resolvable:$true] %s29
      %35 = dma.hbm_to_vmem [thread:$0]  %s28, 256, %s30, [#allocation6], 64, 64, 4
    $region9: #{tpu_custom_call.1} parent=1 // pred_fallthru
      _
    // Predicated region
    $region10: #{tpu_custom_call.1} parent=1 // pred_check
      _
    $region11: #{tpu_custom_call.1} parent=1 // pred_check_branch
      %37 = sbr.rel (0) target = $region13
    $region12: #{tpu_custom_call.1} parent=1 // pred_region
      %39 = dma.done [#allocation3], 256
    $region13: #{tpu_custom_call.1} parent=1 // pred_fallthru
      _
    // Predicated region
    $region14: #{tpu_custom_call.1} parent=1 // pred_check
      _
    $region15: #{tpu_custom_call.1} parent=1 // pred_check_branch
      %41 = sbr.rel (0) target = $region17
    $region16: #{tpu_custom_call.1} parent=1 // pred_region
      %43 = dma.done [#allocation6], 256
    $region17: #{tpu_custom_call.1} parent=1 // pred_fallthru
      _
    %v45 = vld [vmem:[#allocation2] sm:$0xff]
    %v46 = vld [vmem:[#allocation2 + $0x8] sm:$0xff]
    %v47 = vpack.c.bf16 %v46, %v45
    %v48 = vld [vmem:[#allocation5] sm:$0xf]
    %v49 = vld [vmem:[#allocation5 + $0x4] sm:$0xf]
    %v50 = vld [vmem:[#allocation5 + $0x8] sm:$0xf]
    %v51 = vld [vmem:[#allocation5 + $0xc] sm:$0xf]
    %v56 = vunpack.c.l.b16 %v48
    %v57 = vunpack.c.l.b16 %v49
    %v58 = vunpack.c.l.b16 %v50
    %v59 = vunpack.c.l.b16 %v51
    %v60 = vpack.c.b16 %v57, %v56
    %v61 = vpack.c.b16 %v59, %v58
    %vm64 = vcmask 261120
    %v66 = vsel %vm64, %v47, 0
    %68 = vmatpush.bf16.msra.mxu0 0
    %69 = vmatpush.bf16.msra.mxu0 0
    %70 = vmatpush.bf16.msra.mxu0 0
    %71 = vmatpush.bf16.msra.mxu0 0
    %72 = vmatpush.bf16.msra.mxu0 0
    %73 = vmatpush.bf16.msra.mxu0 0
    %74 = vmatpush.bf16.msra.mxu0 %v61
    %75 = vmatpush.bf16.msra.mxu0 %v60
    %76 = vmatmul.bf16.gmra.mxu0 %v66
    %v77 = vpop.f32.mrf.mxu0
    %v78 = vadd.f32 0.0, %v77
    %v79 = vpop.f32.mrf.mxu0
    %v80 = vadd.f32 0.0, %v79
    %81 = vdwg.mxu0
    %v82 = vpack.c.bf16 %v78, %v78
    %v83 = vpack.c.bf16 %v80, %v80
    %vm84 = vcmask 257024
    %85 = vst.msk [vmem:[#allocation7] sm:$0xf] %vm84, %v82
    %86 = vst.msk [vmem:[#allocation7 + $0x4] sm:$0xf] %vm84, %v83
    // Predicated region
    $region18: #{tpu_custom_call.1} parent=1 // pred_check
      _
    $region19: #{tpu_custom_call.1} parent=1 // pred_check_branch
      %88 = sbr.rel (0) target = $region21
    $region20: #{tpu_custom_call.1} parent=1 // pred_region
      %90 = vsyncadd [#allocation4], 0
      %s91 = sshll.u32 [#allocation7], 4
      %s92 = int_to_ptr.vmem [resolvable:$true] %s91
      %s93 = sshll.u32 %s2, 4
      %s94 = int_to_ptr.hbm [resolvable:$true] %s93
      %99 = dma.vmem_to_hbm [thread:$0]  %s92, 128, %s94, [#allocation4], 64, 64, 4
    $region21: #{tpu_custom_call.1} parent=1 // pred_fallthru
      _
    // Predicated region
    $region22: #{tpu_custom_call.1} parent=1 // pred_check
      _
    $region23: #{tpu_custom_call.1} parent=1 // pred_check_branch
      %101 = sbr.rel (0) target = $region25
    $region24: #{tpu_custom_call.1} parent=1 // pred_region
      %103 = dma.done [#allocation4], 128
    $region25: #{tpu_custom_call.1} parent=1 // pred_fallthru
      _
    %104 = vsyncpa [#allocation3], 1
    %105 = vsyncpa [#allocation6], 1
    %106 = vsyncpa [#allocation4], 1

</llo_original>
